<compile_context>
chip_gen: v7x
topology: tpu7x:2x2x1
jax: 0.10.0
libtpu: 0.0.40
codegen_flags: <defaults>
</compile_context>

<pallas_src>
import functools

import jax
import jax.numpy as jnp
from jax.experimental import pallas as pl
from jax.experimental.pallas import tpu as pltpu


def _shift2d_kernel(x_ref, o_ref, *, amount, W, HW):
    # x_ref / o_ref: (1, 1, Ct, H*W) — one channel-block of one shift-direction
    # group of one batch element. Flat index j = h*W + w.
    a = amount
    g = pl.program_id(1)                    # shift direction, uniform per step
    x = x_ref[0, 0]                         # (Ct, HW)
    col = jax.lax.broadcasted_iota(jnp.int32, x.shape, 1)

    def emit(shift, keep_rolled):
        rolled = pltpu.roll(x, shift, axis=1)
        o_ref[0, 0] = jnp.where(keep_rolled, rolled, x).astype(o_ref.dtype)

    @pl.when(g == 0)
    def _():  # shift DOWN along H; rows [:a] keep original x
        emit(a * W, col >= a * W)

    @pl.when(g == 1)
    def _():  # shift UP along H; rows [H-a:] keep original x
        emit(HW - a * W, col < HW - a * W)

    @pl.when(g == 2)
    def _():  # shift RIGHT along W; cols [:a] keep original x
        emit(a, (col % W) >= a)

    @pl.when(g == 3)
    def _():  # shift LEFT along W; cols [W-a:] keep original x
        emit(HW - a, (col % W) < W - a)


def _pick_channel_tile(q, hw_bytes, cap_bytes=2 << 20):
    """Largest channel tile that divides q, keeps the block under cap_bytes,
    and satisfies the (8,128) rule (multiple of 8, or == full extent q)."""
    if q * hw_bytes <= cap_bytes:
        return q
    for cand in range(8 * (q // 8), 0, -8):
        if q % cand == 0 and cand * hw_bytes <= cap_bytes:
            return cand
    return q


def shift2d(x: jax.Array, amount: int = 1) -> jax.Array:
    """Pallas TPU implementation of Shift2d.forward. x is NCHW."""
    N, C, H, W = x.shape
    if C % 4 != 0:
        raise ValueError("shift2d Pallas kernel requires C % 4 == 0 "
                         "(matches s2vit channel counts).")
    if not (1 <= amount < min(H, W)):
        raise ValueError("amount must satisfy 1 <= amount < min(H, W).")

    q = C // 4
    HW = H * W
    itemsize = jnp.dtype(x.dtype).itemsize
    ct = _pick_channel_tile(q, HW * itemsize)
    n_cb = q // ct

    # Free (metadata-only) reshape of contiguous NCHW: C -> (4, q), (H, W) -> H*W.
    xr = x.reshape(N, 4, q, HW)

    kernel = functools.partial(_shift2d_kernel, amount=amount, W=W, HW=HW)
    block = (1, 1, ct, HW)
    spec = pl.BlockSpec(block, lambda n, g, cb: (n, g, cb, 0))

    out = pl.pallas_call(
        kernel,
        out_shape=jax.ShapeDtypeStruct((N, 4, q, HW), x.dtype),
        grid_spec=pltpu.PrefetchScalarGridSpec(
            num_scalar_prefetch=0,
            grid=(N, 4, n_cb),
            in_specs=[spec],
            out_specs=spec,
        ),
        compiler_params=pltpu.CompilerParams(
            dimension_semantics=("parallel", "parallel", "parallel"),
        ),
        cost_estimate=pl.CostEstimate(
            flops=N * C * HW,
            transcendentals=0,
            bytes_accessed=2 * N * C * HW * itemsize,
        ),
    )(xr)
    return out.reshape(N, C, H, W)


def shift2d_reference(x: jax.Array, amount: int = 1) -> jax.Array:
    """Pure-JAX reference mirroring the PyTorch code exactly."""
    c = x.shape[1]
    a = amount
    out = x
    out = out.at[:, : c // 4, a:, :].set(x[:, : c // 4, :-a, :])
    out = out.at[:, c // 4 : c // 2, :-a, :].set(x[:, c // 4 : c // 2, a:, :])
    out = out.at[:, c // 2 : 3 * c // 4, :, a:].set(x[:, c // 2 : 3 * c // 4, :, :-a])
    out = out.at[:, 3 * c // 4 :, :, :-a].set(x[:, 3 * c // 4 :, :, a:])
    return out


if __name__ == "__main__":
    key = jax.random.PRNGKey(0)
    N, C, H, W = 2, 8, 16, 16
    amount = 1

    x = jax.random.normal(key, (N, C, H, W), dtype=jnp.float32)

    out = shift2d(x, amount=amount)
    out = jax.block_until_ready(out)

    ref = shift2d_reference(x, amount=amount)
    assert out.shape == ref.shape and out.dtype == ref.dtype
    assert jnp.allclose(out, ref), "Pallas Shift2d output mismatch vs reference"

    print("KERNEL_OK")
</pallas_src>

<mosaic_0001>
module attributes {stable_mosaic.version = 11 : i64} {
  func.func @_shift2d_kernel(%arg0: i32, %arg1: i32, %arg2: i32, %arg3: memref<1x1x2x256xf32, #tpu.memory_space<vmem>>, %arg4: memref<1x1x2x256xf32, #tpu.memory_space<vmem>>) attributes {dimension_semantics = [#tpu.dimension_semantics<parallel>, #tpu.dimension_semantics<parallel>, #tpu.dimension_semantics<parallel>], iteration_bounds = array<i64: 2, 4, 1>, scalar_prefetch = 0 : i64, scratch_operands = 0 : i64, tpu.core_type = #tpu.core_type<tc>, window_params = [{transform_indices = @transform_0, window_bounds = array<i64: 1, 1, 2, 256>}, {transform_indices = @transform_1, window_bounds = array<i64: 1, 1, 2, 256>}]} {
    %c0 = arith.constant 0 : index
    %c0_0 = arith.constant 0 : index
    %c0_1 = arith.constant 0 : index
    %c0_2 = arith.constant 0 : index
    %0 = vector.load %arg3[%c0, %c0_0, %c0_1, %c0_2] : memref<1x1x2x256xf32, #tpu.memory_space<vmem>>, vector<1x1x2x256xf32>
    %1 = vector.shape_cast %0 : vector<1x1x2x256xf32> to vector<2x256xf32>
    %2 = tpu.iota {dimensions = array<i32: 1>} : vector<2x256xi32>
    %c0_i32 = arith.constant 0 : i32
    %3 = arith.cmpi eq, %arg1, %c0_i32 : i32
    %4 = arith.extui %3 : i1 to i32
    %c0_i32_3 = arith.constant 0 : i32
    %5 = arith.cmpi ne, %4, %c0_i32_3 : i32
    scf.if %5 {
      %c16_i32 = arith.constant 16 : i32
      %15 = vector.broadcast %c16_i32 : i32 to vector<2x256xi32>
      %16 = arith.cmpi sge, %2, %15 : vector<2x256xi32>
      %c16_i32_7 = arith.constant 16 : i32
      %17 = tpu.dynamic_rotate %1 by %c16_i32_7 dim 1 : vector<2x256xf32>, i32 -> vector<2x256xf32>
      %18 = arith.select %16, %17, %1 : vector<2x256xi1>, vector<2x256xf32>
      %c0_8 = arith.constant 0 : index
      %c0_9 = arith.constant 0 : index
      %c0_10 = arith.constant 0 : index
      %c0_11 = arith.constant 0 : index
      %19 = vector.load %arg4[%c0_8, %c0_9, %c0_10, %c0_11] : memref<1x1x2x256xf32, #tpu.memory_space<vmem>>, vector<1x1x2x256xf32>
      %20 = vector.shape_cast %19 : vector<1x1x2x256xf32> to vector<2x256xf32>
      %21 = vector.shape_cast %18 : vector<2x256xf32> to vector<1x1x2x256xf32>
      tpu.vector_store %arg4[%c0_8, %c0_9, %c0_10, %c0_11], %21 {strides = array<i32>} : memref<1x1x2x256xf32, #tpu.memory_space<vmem>>, vector<1x1x2x256xf32>,
    } else {
    }
    %c1_i32 = arith.constant 1 : i32
    %6 = arith.cmpi eq, %arg1, %c1_i32 : i32
    %7 = arith.extui %6 : i1 to i32
    %c0_i32_4 = arith.constant 0 : i32
    %8 = arith.cmpi ne, %7, %c0_i32_4 : i32
    scf.if %8 {
      %c240_i32 = arith.constant 240 : i32
      %15 = vector.broadcast %c240_i32 : i32 to vector<2x256xi32>
      %16 = arith.cmpi slt, %2, %15 : vector<2x256xi32>
      %c240_i32_7 = arith.constant 240 : i32
      %17 = tpu.dynamic_rotate %1 by %c240_i32_7 dim 1 : vector<2x256xf32>, i32 -> vector<2x256xf32>
      %18 = arith.select %16, %17, %1 : vector<2x256xi1>, vector<2x256xf32>
      %c0_8 = arith.constant 0 : index
      %c0_9 = arith.constant 0 : index
      %c0_10 = arith.constant 0 : index
      %c0_11 = arith.constant 0 : index
      %19 = vector.load %arg4[%c0_8, %c0_9, %c0_10, %c0_11] : memref<1x1x2x256xf32, #tpu.memory_space<vmem>>, vector<1x1x2x256xf32>
      %20 = vector.shape_cast %19 : vector<1x1x2x256xf32> to vector<2x256xf32>
      %21 = vector.shape_cast %18 : vector<2x256xf32> to vector<1x1x2x256xf32>
      tpu.vector_store %arg4[%c0_8, %c0_9, %c0_10, %c0_11], %21 {strides = array<i32>} : memref<1x1x2x256xf32, #tpu.memory_space<vmem>>, vector<1x1x2x256xf32>,
    } else {
    }
    %c2_i32 = arith.constant 2 : i32
    %9 = arith.cmpi eq, %arg1, %c2_i32 : i32
    %10 = arith.extui %9 : i1 to i32
    %c0_i32_5 = arith.constant 0 : i32
    %11 = arith.cmpi ne, %10, %c0_i32_5 : i32
    scf.if %11 {
      %c16_i32 = arith.constant 16 : i32
      %c0_i32_7 = arith.constant 0 : i32
      %15 = arith.cmpi eq, %c16_i32, %c0_i32_7 : i32
      %c1_i32_8 = arith.constant 1 : i32
      %16 = arith.select %15, %c1_i32_8, %c16_i32 : i32
      %17 = vector.broadcast %16 : i32 to vector<2x256xi32>
      %18 = arith.remsi %2, %17 : vector<2x256xi32>
      %c0_i32_9 = arith.constant 0 : i32
      %19 = vector.broadcast %c0_i32_9 : i32 to vector<2x256xi32>
      %20 = arith.cmpi ne, %18, %19 : vector<2x256xi32>
      %c0_i32_10 = arith.constant 0 : i32
      %21 = vector.broadcast %c0_i32_10 : i32 to vector<2x256xi32>
      %22 = arith.cmpi slt, %18, %21 : vector<2x256xi32>
      %c0_i32_11 = arith.constant 0 : i32
      %23 = arith.cmpi slt, %16, %c0_i32_11 : i32
      %24 = vector.broadcast %23 : i1 to vector<2x256xi1>
      %25 = vector.broadcast %24 : vector<2x256xi1> to vector<2x256xi1>
      %26 = arith.xori %22, %25 : vector<2x256xi1>
      %27 = arith.andi %26, %20 : vector<2x256xi1>
      %28 = vector.broadcast %16 : i32 to vector<2x256xi32>
      %29 = arith.addi %18, %28 : vector<2x256xi32>
      %30 = arith.select %27, %29, %18 : vector<2x256xi1>, vector<2x256xi32>
      %c1_i32_12 = arith.constant 1 : i32
      %31 = vector.broadcast %c1_i32_12 : i32 to vector<2x256xi32>
      %32 = arith.cmpi sge, %30, %31 : vector<2x256xi32>
      %c1_i32_13 = arith.constant 1 : i32
      %33 = tpu.dynamic_rotate %1 by %c1_i32_13 dim 1 : vector<2x256xf32>, i32 -> vector<2x256xf32>
      %34 = arith.select %32, %33, %1 : vector<2x256xi1>, vector<2x256xf32>
      %c0_14 = arith.constant 0 : index
      %c0_15 = arith.constant 0 : index
      %c0_16 = arith.constant 0 : index
      %c0_17 = arith.constant 0 : index
      %35 = vector.load %arg4[%c0_14, %c0_15, %c0_16, %c0_17] : memref<1x1x2x256xf32, #tpu.memory_space<vmem>>, vector<1x1x2x256xf32>
      %36 = vector.shape_cast %35 : vector<1x1x2x256xf32> to vector<2x256xf32>
      %37 = vector.shape_cast %34 : vector<2x256xf32> to vector<1x1x2x256xf32>
      tpu.vector_store %arg4[%c0_14, %c0_15, %c0_16, %c0_17], %37 {strides = array<i32>} : memref<1x1x2x256xf32, #tpu.memory_space<vmem>>, vector<1x1x2x256xf32>,
    } else {
    }
    %c3_i32 = arith.constant 3 : i32
    %12 = arith.cmpi eq, %arg1, %c3_i32 : i32
    %13 = arith.extui %12 : i1 to i32
    %c0_i32_6 = arith.constant 0 : i32
    %14 = arith.cmpi ne, %13, %c0_i32_6 : i32
    scf.if %14 {
      %c16_i32 = arith.constant 16 : i32
      %c0_i32_7 = arith.constant 0 : i32
      %15 = arith.cmpi eq, %c16_i32, %c0_i32_7 : i32
      %c1_i32_8 = arith.constant 1 : i32
      %16 = arith.select %15, %c1_i32_8, %c16_i32 : i32
      %17 = vector.broadcast %16 : i32 to vector<2x256xi32>
      %18 = arith.remsi %2, %17 : vector<2x256xi32>
      %c0_i32_9 = arith.constant 0 : i32
      %19 = vector.broadcast %c0_i32_9 : i32 to vector<2x256xi32>
      %20 = arith.cmpi ne, %18, %19 : vector<2x256xi32>
      %c0_i32_10 = arith.constant 0 : i32
      %21 = vector.broadcast %c0_i32_10 : i32 to vector<2x256xi32>
      %22 = arith.cmpi slt, %18, %21 : vector<2x256xi32>
      %c0_i32_11 = arith.constant 0 : i32
      %23 = arith.cmpi slt, %16, %c0_i32_11 : i32
      %24 = vector.broadcast %23 : i1 to vector<2x256xi1>
      %25 = vector.broadcast %24 : vector<2x256xi1> to vector<2x256xi1>
      %26 = arith.xori %22, %25 : vector<2x256xi1>
      %27 = arith.andi %26, %20 : vector<2x256xi1>
      %28 = vector.broadcast %16 : i32 to vector<2x256xi32>
      %29 = arith.addi %18, %28 : vector<2x256xi32>
      %30 = arith.select %27, %29, %18 : vector<2x256xi1>, vector<2x256xi32>
      %c15_i32 = arith.constant 15 : i32
      %31 = vector.broadcast %c15_i32 : i32 to vector<2x256xi32>
      %32 = arith.cmpi slt, %30, %31 : vector<2x256xi32>
      %c255_i32 = arith.constant 255 : i32
      %33 = tpu.dynamic_rotate %1 by %c255_i32 dim 1 : vector<2x256xf32>, i32 -> vector<2x256xf32>
      %34 = arith.select %32, %33, %1 : vector<2x256xi1>, vector<2x256xf32>
      %c0_12 = arith.constant 0 : index
      %c0_13 = arith.constant 0 : index
      %c0_14 = arith.constant 0 : index
      %c0_15 = arith.constant 0 : index
      %35 = vector.load %arg4[%c0_12, %c0_13, %c0_14, %c0_15] : memref<1x1x2x256xf32, #tpu.memory_space<vmem>>, vector<1x1x2x256xf32>
      %36 = vector.shape_cast %35 : vector<1x1x2x256xf32> to vector<2x256xf32>
      %37 = vector.shape_cast %34 : vector<2x256xf32> to vector<1x1x2x256xf32>
      tpu.vector_store %arg4[%c0_12, %c0_13, %c0_14, %c0_15], %37 {strides = array<i32>} : memref<1x1x2x256xf32, #tpu.memory_space<vmem>>, vector<1x1x2x256xf32>,
    } else {
    }
    return
  }
  func.func @transform_0(%arg0: i32, %arg1: i32, %arg2: i32) -> (i32, i32, i32, i32) {
    %c0_i32 = arith.constant 0 : i32
    %c0_i32_0 = arith.constant 0 : i32
    return %arg0, %arg1, %arg2, %c0_i32 : i32, i32, i32, i32
  }
  func.func @transform_1(%arg0: i32, %arg1: i32, %arg2: i32) -> (i32, i32, i32, i32) {
    %c0_i32 = arith.constant 0 : i32
    %c0_i32_0 = arith.constant 0 : i32
    return %arg0, %arg1, %arg2, %c0_i32 : i32, i32, i32, i32
  }
}

</mosaic_0001>

<llo_original>
// kernel: tpu_custom_call.1
$region0: #{tpu_custom_call.1}
  #allocation0 [shape = 'u32[]', space=smem, size = 0x4, offset = 0x4, fixed_abs, tag = 'smem constant byte address 0x4 - core index']
  #allocation1 [shape = 'u32[144,128]{1,0:T(1,128)}', space=vmem, size = 0x12000, scoped, tag = 'internal scratch']
  %s0 = inlined_call_operand.hbm [shape: f32[2,4,2,256], index: 0, kind: input, shape index: {}]
  %s1 = inlined_call_operand.hbm [shape: f32[2,4,2,256], index: 1, kind: output, shape index: {}]
  %s2 = sld [smem:[#allocation0]]
  $region57: #{tpu_custom_call.1} parent=0
    _
  %s4 = ssub.s32 1, %s2
  %s5 = scalar_select 0, %s4, %s2
  $region1: #{tpu_custom_call.1} parent=0
    #allocation2 [shape = 'u8[4096]{0}', space=vmem, size = 0x1000, scoped, tag = 'input window, operand 0']
    #allocation3 [shape = 's32[2]{0}', space=sflag, size = 0x8, scoped, tag = 'scoped memory for tpu_custom_call.1']
    #allocation4 [shape = 's32[2]{0}', space=sflag, size = 0x8, scoped, tag = 'scoped memory for tpu_custom_call.1']
    #allocation5 [shape = 'u8[4096]{0}', space=vmem, size = 0x1000, scoped, tag = 'output window, operand 0']
    %6 = vsyncpa [#allocation3], 0
    %s7 = scalar_lea.sflag [#allocation3], 1
    %8 = vsyncpa %s7, 0
    %9 = vsyncpa [#allocation4], 0
    %s10 = scalar_lea.sflag [#allocation4], 1
    %11 = vsyncpa %s10, 0
    loop: start=0, step=1, limit=10
    $region2: #{tpu_custom_call.1} parent=1 // loop_pre_header
      _
    $region3: #{tpu_custom_call.1} parent=1 // loop_header
      %s13 = sphi 0, %s17
      %p14 = scmp.ge.s32.totalorder %s13, 10
      %s20 = sphi 0, %s39
      %s21 = sphi 0, %s35
      %s22 = sphi 0, %s31
      %s23 = sphi 0, %s20
      %s24 = sphi 0, %s21
      %s25 = sphi 0, %s22
      %s26 = sphi 0, %s23
      %s27 = sphi 0, %s24
      %s28 = sphi 0, %s25
      %s46 = sphi 0, %s48
      %s49 = sphi 0, %s46
      %s50 = sphi 0, %s49
      %s66 = sphi 0, %s50
      %s76 = sphi 0, %s78
      %s79 = sphi 0, %s76
      %s80 = sphi 0, %s79
      %s96 = sphi 0, %s80
    $region4: #{tpu_custom_call.1} parent=1 // loop_header_branch
      %16 = sbr.rel (%p14) target = $region8
    $region5: #{tpu_custom_call.1} parent=1 // loop_body
      %s18 = ssub.s32 %s13, 1
      %s19 = ssub.s32 %s13, 2
      %s29 = sadd.s32 1, %s22
      %p30 = scmp.ge.s32.totalorder %s29, 1
      %s31 = scalar_select %p30, 0, %s29
      %s32 = sadd.s32 1, %s21
      %s33 = scalar_select %p30, %s32, %s21
      %p34 = scmp.ge.s32.totalorder %s33, 4
      %s35 = scalar_select %p34, 0, %s33
      %s36 = sadd.s32 1, %s20
      %s37 = scalar_select %p34, %s36, %s20
      %p38 = scmp.ge.s32.totalorder %s37, 2
      %s39 = scalar_select %p38, 0, %s37
      %s40 = ssub.s32 %s20, %s39
      %s41 = ssub.s32 %s21, %s35
      %s42 = sor.u32 %s40, %s41
      %s43 = ssub.s32 %s22, %s31
      %s44 = sor.u32 %s42, %s43
      %p45 = scmp.eq.s32.totalorder %s44, 0
      %s47 = sadd.s32 %s46, 1
      %s48 = scalar_select %p45, %s46, %s47
      %p51 = pneg %p45
      %p52 = scmp.eq.s32.totalorder %s13, 7
      %p53 = por %p51, %p52
      %p54 = scmp.ne.s32.totalorder %s46, %s49
      %p55 = scmp.eq.s32.totalorder %s13, 0
      %p56 = por %p54, %p55
      %p57 = scmp.ne.s32.totalorder %s46, %s49
      %p58 = scmp.eq.s32.totalorder %s18, 7
      %p59 = por %p57, %p58
      %p60 = scmp.ne.s32.totalorder %s49, %s50
      %p61 = scmp.eq.s32.totalorder %s18, 0
      %p62 = por %p60, %p61
      %p63 = scmp.ne.s32.totalorder %s49, %s50
      %p64 = scmp.eq.s32.totalorder %s19, 7
      %p65 = por %p63, %p64
      %p67 = scmp.ne.s32.totalorder %s50, %s66
      %p68 = scmp.eq.s32.totalorder %s19, 0
      %p69 = por %p67, %p68
      %s70 = ssub.s32 %s20, %s39
      %s71 = ssub.s32 %s21, %s35
      %s72 = sor.u32 %s70, %s71
      %s73 = ssub.s32 %s22, %s31
      %s74 = sor.u32 %s72, %s73
      %p75 = scmp.eq.s32.totalorder %s74, 0
      %s77 = sadd.s32 %s76, 1
      %s78 = scalar_select %p75, %s76, %s77
      %p81 = pneg %p75
      %p82 = scmp.eq.s32.totalorder %s13, 7
      %p83 = por %p81, %p82
      %p84 = scmp.ne.s32.totalorder %s76, %s79
      %p85 = scmp.eq.s32.totalorder %s13, 0
      %p86 = por %p84, %p85
      %p87 = scmp.ne.s32.totalorder %s76, %s79
      %p88 = scmp.eq.s32.totalorder %s18, 7
      %p89 = por %p87, %p88
      %p90 = scmp.ne.s32.totalorder %s79, %s80
      %p91 = scmp.eq.s32.totalorder %s18, 0
      %p92 = por %p90, %p91
      %p93 = scmp.ne.s32.totalorder %s79, %s80
      %p94 = scmp.eq.s32.totalorder %s19, 7
      %p95 = por %p93, %p94
      %p97 = scmp.ne.s32.totalorder %s80, %s96
      %p98 = scmp.eq.s32.totalorder %s19, 0
      %p99 = por %p97, %p98
      %p100 = scmp.le.s32.totalorder 1, %s13
      %p101 = scmp.lt.s32.totalorder %s13, 9
      %p102 = pnand %p100, %p101
      %p103 = pneg %p102
      // Predicated region
      $region9: #{tpu_custom_call.1} parent=5 // pred_check
        _
      $region10: #{tpu_custom_call.1} parent=5 // pred_check_branch
        %105 = sbr.rel (%p102) target = $region12
      $region11: #{tpu_custom_call.1} parent=5 // pred_region
        %s106 = ssub.s32 %s13, 1
      $region12: #{tpu_custom_call.1} parent=5 // pred_fallthru
        _
      %p107 = scmp.lt.s32.totalorder %s13, 8
      // Predicated region
      $region13: #{tpu_custom_call.1} parent=5 // pred_check
        %p108 = pneg %p107
      $region14: #{tpu_custom_call.1} parent=5 // pred_check_branch
        %110 = sbr.rel (%p108) target = $region16
      $region15: #{tpu_custom_call.1} parent=5 // pred_region
        // Predicated region
        $region17: #{tpu_custom_call.1} parent=15 // pred_check
          %p111 = pneg %p56
        $region18: #{tpu_custom_call.1} parent=15 // pred_check_branch
          %113 = sbr.rel (%p111) target = $region20
        $region19: #{tpu_custom_call.1} parent=15 // pred_region
          %s114 = sand.u32 %s46, 1
          %s115 = scalar_lea.sflag [#allocation3], %s114
          %s116 = sand.u32 %s46, 1
          %s117 = smul.addr %s116, 4
          %s118 = scalar_lea.vmem [#allocation2], %s117
          %s120 = ssub.s32 64, 64
          %121 = vsyncadd %s115, %s120
          %s122 = smul.addr %s22, 2
          %s123 = smul.addr %s21, 2
          %s124 = sadd.s32 %s122, %s123
          %s125 = smul.addr %s20, 8
          %s126 = sadd.s32 %s124, %s125
          %s127 = smul.addr %s126, 32
          %s128 = scalar_lea.hbm %s0, %s127
          %s130 = sshll.u32 %s118, 4
          %s131 = int_to_ptr.vmem [resolvable:$true] %s130
          %133 = dma.hbm_to_vmem [thread:$0]  %s128, 64, %s131, %s115
        $region20: #{tpu_custom_call.1} parent=15 // pred_fallthru
          _
      $region16: #{tpu_custom_call.1} parent=5 // pred_fallthru
        _
      %p134 = scmp.le.s32.totalorder 1, %s13
      %p135 = scmp.lt.s32.totalorder %s13, 9
      %p136 = pnand %p134, %p135
      %p137 = pneg %p136
      // Predicated region
      $region21: #{tpu_custom_call.1} parent=5 // pred_check
        _
      $region22: #{tpu_custom_call.1} parent=5 // pred_check_branch
        %139 = sbr.rel (%p136) target = $region24
      $region23: #{tpu_custom_call.1} parent=5 // pred_region
        %s140 = ssub.s32 %s13, 1
        %s141 = sand.u32 %s49, 1
        %s142 = scalar_lea.sflag [#allocation3], %s141
        %s143 = sand.u32 %s49, 1
        %s144 = smul.addr %s143, 4
        %s145 = scalar_lea.vmem [#allocation2], %s144
        // Predicated region
        $region25: #{tpu_custom_call.1} parent=23 // pred_check
          %p146 = pneg %p62
        $region26: #{tpu_custom_call.1} parent=23 // pred_check_branch
          %148 = sbr.rel (%p146) target = $region28
        $region27: #{tpu_custom_call.1} parent=23 // pred_region
          %149 = dma.done %s142, 64
        $region28: #{tpu_custom_call.1} parent=23 // pred_fallthru
          _
        %s150 = sand.u32 %s49, 1
        %s151 = scalar_lea.sflag [#allocation3], %s150
        %s152 = sand.u32 %s49, 1
        %s153 = smul.addr %s152, 4
        %s154 = scalar_lea.vmem [#allocation2], %s153
        %p155 = pneg %p62
        %p156 = pneg %p59
        %p157 = pneg %p92
        %p158 = pneg %p89
        %s159 = sand.u32 %s79, 1
        %s160 = scalar_lea.sflag [#allocation4], %s159
        %s161 = sand.u32 %s79, 1
        %s162 = smul.addr %s161, 4
        %s163 = scalar_lea.vmem [#allocation5], %s162
        %v164 = vld [vmem:[%s145] sm:$0xf]
        %v165 = vlaneseq
        %v166 = vand.u32 %v165, 127
        %v167 = vadd.s32 %v166, 128
        %p168 = scmp.eq.s32.totalorder %s24, 0
        // Predicated region
        $region29: #{tpu_custom_call.1} parent=23 // pred_check
          %p169 = pneg %p168
        $region30: #{tpu_custom_call.1} parent=23 // pred_check_branch
          %171 = sbr.rel (%p169) target = $region32
        $region31: #{tpu_custom_call.1} parent=23 // pred_region
          %vm172 = vcmp.ge.s32.totalorder %v166, 16
          %vm173 = vcmp.ge.s32.totalorder %v167, 16
          %v176 = vunpack.c.l.s4 1983009808
          %v177 = vunpack.c.0.s8 %v176
          %v178 = vlaneseq
          %v179 = vshrl.u32 %v178, 7
          %v180 = vsub.s32 %v177, %v179
          %v181 = vrot.slane %v164, %v180
          %v182 = vcombine.high %v181, %v181
          %185 = vrot.lane.b32.xlu0 %v181, 16
          %v186 = vpop.permute.xlu0 %185
          %187 = vrot.lane.b32.xlu0 %v182, 16
          %v188 = vpop.permute.xlu0 %187
          %vm189 = vcmp.lt.s32.totalorder %v166, 16
          %v190 = vsel %vm189, %v186, %v188
          %v191 = vsel %vm189, %v188, %v186
          %v192 = vsel %vm172, %v191, %v181
          %v193 = vsel %vm173, %v190, %v182
          %v196 = vcombine.low %v192, %v193
          %v198 = vunpack.c.l.s4 1983009808
          %v199 = vunpack.c.0.s8 %v198
          %v200 = vlaneseq
          %v201 = vshrl.u32 %v200, 7
          %v202 = vsub.s32 %v199, %v201
          %v203 = vrot.slane %v196, %v202
          %205 = vst [vmem:[%s163] sm:$0xf] %v203
        $region32: #{tpu_custom_call.1} parent=23 // pred_fallthru
          _
        %p206 = scmp.eq.s32.totalorder %s24, 1
        // Predicated region
        $region33: #{tpu_custom_call.1} parent=23 // pred_check
          %p207 = pneg %p206
        $region34: #{tpu_custom_call.1} parent=23 // pred_check_branch
          %209 = sbr.rel (%p207) target = $region36
        $region35: #{tpu_custom_call.1} parent=23 // pred_region
          %vm210 = vcmp.lt.s32.totalorder %v166, 240
          %vm211 = vcmp.lt.s32.totalorder %v167, 240
          %v214 = vunpack.c.l.s4 1983009808
          %v215 = vunpack.c.0.s8 %v214
          %v216 = vlaneseq
          %v217 = vshrl.u32 %v216, 7
          %v218 = vsub.s32 %v215, %v217
          %v219 = vrot.slane %v164, %v218
          %v220 = vcombine.high %v219, %v219
          %223 = vrot.lane.b32.xlu0 %v219, 112
          %v224 = vpop.permute.xlu0 %223
          %225 = vrot.lane.b32.xlu0 %v220, 112
          %v226 = vpop.permute.xlu0 %225
          %vm227 = vcmp.lt.s32.totalorder %v166, 112
          %v228 = vsel %vm227, %v224, %v226
          %v229 = vsel %vm227, %v226, %v224
          %v230 = vsel %vm210, %v228, %v219
          %v231 = vsel %vm211, %v229, %v220
          %v234 = vcombine.low %v230, %v231
          %v236 = vunpack.c.l.s4 1983009808
          %v237 = vunpack.c.0.s8 %v236
          %v238 = vlaneseq
          %v239 = vshrl.u32 %v238, 7
          %v240 = vsub.s32 %v237, %v239
          %v241 = vrot.slane %v234, %v240
          %243 = vst [vmem:[%s163] sm:$0xf] %v241
        $region36: #{tpu_custom_call.1} parent=23 // pred_fallthru
          _
        %p244 = scmp.eq.s32.totalorder %s24, 2
        // Predicated region
        $region37: #{tpu_custom_call.1} parent=23 // pred_check
          %p245 = pneg %p244
        $region38: #{tpu_custom_call.1} parent=23 // pred_check_branch
          %247 = sbr.rel (%p245) target = $region40
        $region39: #{tpu_custom_call.1} parent=23 // pred_region
          %vm248 = vcmp.lt.s32.totalorder %v166, 0
          %v249 = vsub.s32 0, %v166
          %v250 = vsel %vm248, %v249, %v166
          %v251 = vshrl.u32 %v250, 4
          %v252 = vand.u32 %v250, 15
          %v253 = vsub.s32 0, %v252
          %v254 = vsel %vm248, %v253, %v252
          %vm255 = vcmp.lt.s32.totalorder %v167, 0
          %v256 = vsub.s32 0, %v167
          %v257 = vsel %vm255, %v256, %v167
          %v258 = vshrl.u32 %v257, 4
          %v259 = vand.u32 %v257, 15
          %v260 = vsub.s32 0, %v259
          %v261 = vsel %vm255, %v260, %v259
          %vm262 = vcmp.ne.s32.totalorder %v254, 0
          %vm263 = vcmp.ne.s32.totalorder %v261, 0
          %vm264 = vcmp.lt.s32.totalorder %v254, 0
          %vm265 = vcmp.lt.s32.totalorder %v261, 0
          %vm266 = vmand %vm264, %vm262
          %vm267 = vmand %vm265, %vm263
          %v268 = vadd.s32 %v254, 16
          %v269 = vadd.s32 %v261, 16
          %v270 = vsel %vm266, %v268, %v254
          %v271 = vsel %vm267, %v269, %v261
          %vm272 = vcmp.ge.s32.totalorder %v270, 1
          %vm273 = vcmp.ge.s32.totalorder %v271, 1
          %v276 = vunpack.c.l.s4 1983009808
          %v277 = vunpack.c.0.s8 %v276
          %v278 = vlaneseq
          %v279 = vshrl.u32 %v278, 7
          %v280 = vsub.s32 %v277, %v279
          %v281 = vrot.slane %v164, %v280
          %v282 = vcombine.high %v281, %v281
          %285 = vrot.lane.b32.xlu0 %v281, 1
          %v286 = vpop.permute.xlu0 %285
          %287 = vrot.lane.b32.xlu0 %v282, 1
          %v288 = vpop.permute.xlu0 %287
          %vm289 = vcmp.lt.s32.totalorder %v166, 1
          %v290 = vsel %vm289, %v286, %v288
          %v291 = vsel %vm289, %v288, %v286
          %v292 = vsel %vm272, %v291, %v281
          %v293 = vsel %vm273, %v290, %v282
          %v296 = vcombine.low %v292, %v293
          %v298 = vunpack.c.l.s4 1983009808
          %v299 = vunpack.c.0.s8 %v298
          %v300 = vlaneseq
          %v301 = vshrl.u32 %v300, 7
          %v302 = vsub.s32 %v299, %v301
          %v303 = vrot.slane %v296, %v302
          %305 = vst [vmem:[%s163] sm:$0xf] %v303
        $region40: #{tpu_custom_call.1} parent=23 // pred_fallthru
          _
        %p306 = scmp.eq.s32.totalorder %s24, 3
        // Predicated region
        $region41: #{tpu_custom_call.1} parent=23 // pred_check
          %p307 = pneg %p306
        $region42: #{tpu_custom_call.1} parent=23 // pred_check_branch
          %309 = sbr.rel (%p307) target = $region44
        $region43: #{tpu_custom_call.1} parent=23 // pred_region
          %vm310 = vcmp.lt.s32.totalorder %v166, 0
          %v311 = vsub.s32 0, %v166
          %v312 = vsel %vm310, %v311, %v166
          %v313 = vshrl.u32 %v312, 4
          %v314 = vand.u32 %v312, 15
          %v315 = vsub.s32 0, %v314
          %v316 = vsel %vm310, %v315, %v314
          %vm317 = vcmp.lt.s32.totalorder %v167, 0
          %v318 = vsub.s32 0, %v167
          %v319 = vsel %vm317, %v318, %v167
          %v320 = vshrl.u32 %v319, 4
          %v321 = vand.u32 %v319, 15
          %v322 = vsub.s32 0, %v321
          %v323 = vsel %vm317, %v322, %v321
          %vm324 = vcmp.ne.s32.totalorder %v316, 0
          %vm325 = vcmp.ne.s32.totalorder %v323, 0
          %vm326 = vcmp.lt.s32.totalorder %v316, 0
          %vm327 = vcmp.lt.s32.totalorder %v323, 0
          %vm328 = vmand %vm326, %vm324
          %vm329 = vmand %vm327, %vm325
          %v330 = vadd.s32 %v316, 16
          %v331 = vadd.s32 %v323, 16
          %v332 = vsel %vm328, %v330, %v316
          %v333 = vsel %vm329, %v331, %v323
          %vm334 = vcmp.lt.s32.totalorder %v332, 15
          %vm335 = vcmp.lt.s32.totalorder %v333, 15
          %v338 = vunpack.c.l.s4 1983009808
          %v339 = vunpack.c.0.s8 %v338
          %v340 = vlaneseq
          %v341 = vshrl.u32 %v340, 7
          %v342 = vsub.s32 %v339, %v341
          %v343 = vrot.slane %v164, %v342
          %v344 = vcombine.high %v343, %v343
          %347 = vrot.lane.b32.xlu0 %v343, 127
          %v348 = vpop.permute.xlu0 %347
          %349 = vrot.lane.b32.xlu0 %v344, 127
          %v350 = vpop.permute.xlu0 %349
          %vm351 = vcmp.lt.s32.totalorder %v166, 127
          %v352 = vsel %vm351, %v348, %v350
          %v353 = vsel %vm351, %v350, %v348
          %v354 = vsel %vm334, %v352, %v343
          %v355 = vsel %vm335, %v353, %v344
          %v358 = vcombine.low %v354, %v355
          %v360 = vunpack.c.l.s4 1983009808
          %v361 = vunpack.c.0.s8 %v360
          %v362 = vlaneseq
          %v363 = vshrl.u32 %v362, 7
          %v364 = vsub.s32 %v361, %v363
          %v365 = vrot.slane %v358, %v364
          %367 = vst [vmem:[%s163] sm:$0xf] %v365
        $region44: #{tpu_custom_call.1} parent=23 // pred_fallthru
          _
        %s368 = sand.u32 %s79, 1
        %s369 = scalar_lea.sflag [#allocation4], %s368
        %s370 = sand.u32 %s79, 1
        %s371 = smul.addr %s370, 4
        %s372 = scalar_lea.vmem [#allocation5], %s371
        // Predicated region
        $region45: #{tpu_custom_call.1} parent=23 // pred_check
          %p373 = pneg %p89
        $region46: #{tpu_custom_call.1} parent=23 // pred_check_branch
          %375 = sbr.rel (%p373) target = $region48
        $region47: #{tpu_custom_call.1} parent=23 // pred_region
          %s377 = ssub.s32 64, 64
          %378 = vsyncadd %s369, %s377
          %s379 = smul.addr %s25, 2
          %s380 = smul.addr %s24, 2
          %s381 = sadd.s32 %s379, %s380
          %s382 = smul.addr %s23, 8
          %s383 = sadd.s32 %s381, %s382
          %s384 = smul.addr %s383, 32
          %s385 = scalar_lea.hbm %s1, %s384
          %s387 = sshll.u32 %s372, 4
          %s388 = int_to_ptr.vmem [resolvable:$true] %s387
          %390 = dma.vmem_to_hbm [thread:$0]  %s388, 64, %s385, %s369
        $region48: #{tpu_custom_call.1} parent=23 // pred_fallthru
          _
      $region24: #{tpu_custom_call.1} parent=5 // pred_fallthru
        _
      %p391 = scmp.le.s32.totalorder 2, %s13
      // Predicated region
      $region49: #{tpu_custom_call.1} parent=5 // pred_check
        %p392 = pneg %p391
      $region50: #{tpu_custom_call.1} parent=5 // pred_check_branch
        %394 = sbr.rel (%p392) target = $region52
      $region51: #{tpu_custom_call.1} parent=5 // pred_region
        %s395 = ssub.s32 %s13, 2
        // Predicated region
        $region53: #{tpu_custom_call.1} parent=51 // pred_check
          %p396 = pneg %p95
        $region54: #{tpu_custom_call.1} parent=51 // pred_check_branch
          %398 = sbr.rel (%p396) target = $region56
        $region55: #{tpu_custom_call.1} parent=51 // pred_region
          %s399 = sand.u32 %s80, 1
          %s400 = scalar_lea.sflag [#allocation4], %s399
          %s401 = sand.u32 %s80, 1
          %s402 = smul.addr %s401, 4
          %s403 = scalar_lea.vmem [#allocation5], %s402
          %404 = dma.done %s400, 64
        $region56: #{tpu_custom_call.1} parent=51 // pred_fallthru
          _
      $region52: #{tpu_custom_call.1} parent=5 // pred_fallthru
        _
    $region6: #{tpu_custom_call.1} parent=1 // loop_footer
      %s17 = sadd.s32 1, %s13
    $region7: #{tpu_custom_call.1} parent=1 // loop_footer_branch
      %12 = sbr.rel target = $region3
    $region8: #{tpu_custom_call.1} parent=1 // loop_exit
      _
    %405 = vsyncpa [#allocation3], 1
    %s406 = scalar_lea.sflag [#allocation3], 1
    %407 = vsyncpa %s406, 1
    %408 = vsyncpa [#allocation4], 1
    %s409 = scalar_lea.sflag [#allocation4], 1
    %410 = vsyncpa %s409, 1

</llo_original>
